<compile_context>
chip_gen: v6e
topology: v6e:2x2x1
jax: 0.10.0
libtpu: 0.0.40
codegen_flags: <defaults>
</compile_context>

<pallas_src>
import functools

import jax
import jax.numpy as jnp
from jax.experimental import pallas as pl
from jax.experimental.pallas import tpu as pltpu

EPS = 1e-5
LANE = 128
ROW_TILE = 256                        # rows (N*H*W) per grid step for the 1x1 convs
VMEM_LIMIT_BYTES = 32 * 1024 * 1024   # explicit; safe on v5e/v6e (128 MiB) and v7x (64 MiB)


# --------------------------------------------------------------------------
# helpers
# --------------------------------------------------------------------------
def _round_up(x, m):
    return ((x + m - 1) // m) * m


def _pick_row_tile(m, cap=ROW_TILE):
    """Largest multiple-of-8 divisor of m that is <= cap (no row padding needed);
    otherwise fall back to cap-sized tiles with zero row padding."""
    cap = min(cap, _round_up(m, 8))
    for t in range(cap, 7, -1):
        if t % 8 == 0 and m % t == 0:
            return t, m
    return cap, _round_up(m, cap)


def _pad2(w, rows, cols):
    r, c = w.shape
    return jnp.pad(w, ((0, rows - r), (0, cols - c)))


def _pad_row(v, cols, fill):
    c = v.shape[-1]
    return jnp.pad(v, ((0, 0), (0, cols - c)), constant_values=fill)


# --------------------------------------------------------------------------
# Kernels
# --------------------------------------------------------------------------
def _matmul_stats_kernel(x_ref, w_ref, y_ref, s_ref):
    """Stage 1: y = x @ w (raw, pre-BN) + accumulate per-channel sum / sumsq."""
    @pl.when(pl.program_id(0) == 0)
    def _init():
        s_ref[...] = jnp.zeros_like(s_ref)

    y = jnp.dot(x_ref[...], w_ref[...], preferred_element_type=jnp.float32)
    y_ref[...] = y
    s = jnp.sum(y, axis=0, keepdims=True)
    ss = jnp.sum(y * y, axis=0, keepdims=True)
    s_ref[...] = s_ref[...] + jnp.concatenate([s, ss], axis=0)


def _dw_conv_stats_kernel(x_ref, w_ref, s1_ref, g1_ref, b1_ref,
                          y_ref, s2_ref, xpad_ref, *, stride, pre_bn, count):
    """Stage 2: [BN1+ReLU] -> 3x3 depthwise conv (halo padded in VMEM scratch)
    -> raw y2 + accumulate per-channel sum / sumsq."""
    @pl.when(pl.program_id(0) == 0)
    def _init():
        s2_ref[...] = jnp.zeros_like(s2_ref)

    _, H, W, C = x_ref.shape
    _, Ho, Wo, _ = y_ref.shape

    x = x_ref[0]                                           # (H, W, C)
    if pre_bn:
        s1 = s1_ref[...]
        mean = s1[0:1, :] * (1.0 / count)
        var = s1[1:2, :] * (1.0 / count) - mean * mean
        scale = jax.lax.rsqrt(var + EPS) * g1_ref[...]
        x = jnp.maximum((x - mean) * scale + b1_ref[...], 0.0)

    # zero-padded halo in VMEM (no HBM-materialized jnp.pad)
    xpad_ref[...] = jnp.zeros_like(xpad_ref)
    xpad_ref[1:H + 1, 1:W + 1, :] = x

    w = w_ref[...]                                         # (3, 3, C)
    acc = jnp.zeros((Ho, Wo, C), jnp.float32)
    if stride == 1:
        for ky in range(3):
            for kx in range(3):
                acc = acc + xpad_ref[ky:ky + Ho, kx:kx + Wo, :] * w[ky, kx]
    else:
        xp = xpad_ref[...]
        for ky in range(3):
            for kx in range(3):
                patch = jax.lax.slice(
                    xp, (ky, kx, 0),
                    (ky + (Ho - 1) * stride + 1, kx + (Wo - 1) * stride + 1, C),
                    (stride, stride, 1))
                acc = acc + patch * w[ky, kx]

    y_ref[0] = acc
    acc2 = acc.reshape(Ho * Wo, C)
    s = jnp.sum(acc2, axis=0, keepdims=True)
    ss = jnp.sum(acc2 * acc2, axis=0, keepdims=True)
    s2_ref[...] = s2_ref[...] + jnp.concatenate([s, ss], axis=0)


def _bn_relu_matmul_stats_kernel(x_ref, s_in_ref, g_ref, b_ref, w_ref,
                                 y_ref, s_out_ref, *, count, valid_rows):
    """Stage 3: BN2+ReLU (from stats2) -> y = h @ w3 -> raw y3 + stats3.
    Padded rows (row index >= valid_rows) are masked to zero so stats stay exact."""
    @pl.when(pl.program_id(0) == 0)
    def _init():
        s_out_ref[...] = jnp.zeros_like(s_out_ref)

    tm = x_ref.shape[0]
    s_in = s_in_ref[...]
    mean = s_in[0:1, :] * (1.0 / count)
    var = s_in[1:2, :] * (1.0 / count) - mean * mean
    scale = jax.lax.rsqrt(var + EPS) * g_ref[...]

    h = (x_ref[...] - mean) * scale + b_ref[...]
    h = jnp.maximum(h, 0.0)
    row = pl.program_id(0) * tm + jax.lax.broadcasted_iota(jnp.int32, (tm, 1), 0)
    h = jnp.where(row < valid_rows, h, 0.0)

    y = jnp.dot(h, w_ref[...], preferred_element_type=jnp.float32)
    y_ref[...] = y
    s = jnp.sum(y, axis=0, keepdims=True)
    ss = jnp.sum(y * y, axis=0, keepdims=True)
    s_out_ref[...] = s_out_ref[...] + jnp.concatenate([s, ss], axis=0)


def _bn_affine_kernel(*refs, count, has_res):
    """Stage 4: BN3 (from stats3) [+ residual]."""
    if has_res:
        y_ref, s_ref, g_ref, b_ref, r_ref, o_ref = refs
    else:
        y_ref, s_ref, g_ref, b_ref, o_ref = refs
    s = s_ref[...]
    mean = s[0:1, :] * (1.0 / count)
    var = s[1:2, :] * (1.0 / count) - mean * mean
    scale = jax.lax.rsqrt(var + EPS) * g_ref[...]
    out = (y_ref[...] - mean) * scale + b_ref[...]
    if has_res:
        out = out + r_ref[...]
    o_ref[...] = out


# --------------------------------------------------------------------------
# pallas_call wrappers (row-tiled, lane-dense, resident weights/stats)
# --------------------------------------------------------------------------
def _pw_matmul_stats(x_rows, w, tm):
    mp, cin = x_rows.shape
    cout = w.shape[1]
    return pl.pallas_call(
        _matmul_stats_kernel,
        out_shape=(jax.ShapeDtypeStruct((mp, cout), jnp.float32),
                   jax.ShapeDtypeStruct((2, cout), jnp.float32)),
        grid=(mp // tm,),
        in_specs=[pl.BlockSpec((tm, cin), lambda i: (i, 0)),
                  pl.BlockSpec((cin, cout), lambda i: (0, 0))],
        out_specs=(pl.BlockSpec((tm, cout), lambda i: (i, 0)),
                   pl.BlockSpec((2, cout), lambda i: (0, 0))),
        compiler_params=pltpu.CompilerParams(
            dimension_semantics=("arbitrary",),   # stats accumulate across row tiles
            vmem_limit_bytes=VMEM_LIMIT_BYTES),
        cost_estimate=pl.CostEstimate(
            flops=2 * mp * cin * cout, transcendentals=0,
            bytes_accessed=4 * (mp * cin + cin * cout + mp * cout + 2 * cout)),
    )(x_rows, w)


def _dw_conv_stats(x_nhwc, w, s1, g1, b1, *, stride, pre_bn, count, out_hw):
    n, h, wdim, c = x_nhwc.shape
    ho, wo = out_hw
    kern = functools.partial(_dw_conv_stats_kernel, stride=stride,
                             pre_bn=pre_bn, count=count)
    return pl.pallas_call(
        kern,
        out_shape=(jax.ShapeDtypeStruct((n, ho, wo, c), jnp.float32),
                   jax.ShapeDtypeStruct((2, c), jnp.float32)),
        grid=(n,),
        in_specs=[pl.BlockSpec((1, h, wdim, c), lambda i: (i, 0, 0, 0)),
                  pl.BlockSpec((3, 3, c), lambda i: (0, 0, 0)),
                  pl.BlockSpec((2, c), lambda i: (0, 0)),
                  pl.BlockSpec((1, c), lambda i: (0, 0)),
                  pl.BlockSpec((1, c), lambda i: (0, 0))],
        out_specs=(pl.BlockSpec((1, ho, wo, c), lambda i: (i, 0, 0, 0)),
                   pl.BlockSpec((2, c), lambda i: (0, 0))),
        scratch_shapes=[pltpu.VMEM((h + 2, wdim + 2, c), jnp.float32)],
        compiler_params=pltpu.CompilerParams(
            dimension_semantics=("arbitrary",),   # stats accumulate across batch
            vmem_limit_bytes=VMEM_LIMIT_BYTES),
    )(x_nhwc, w, s1, g1, b1)


def _pw_bn_relu_matmul_stats(x_rows, s_in, g, b, w, tm, *, count, valid_rows):
    mp, cin = x_rows.shape
    cout = w.shape[1]
    kern = functools.partial(_bn_relu_matmul_stats_kernel,
                             count=count, valid_rows=valid_rows)
    return pl.pallas_call(
        kern,
        out_shape=(jax.ShapeDtypeStruct((mp, cout), jnp.float32),
                   jax.ShapeDtypeStruct((2, cout), jnp.float32)),
        grid=(mp // tm,),
        in_specs=[pl.BlockSpec((tm, cin), lambda i: (i, 0)),
                  pl.BlockSpec((2, cin), lambda i: (0, 0)),
                  pl.BlockSpec((1, cin), lambda i: (0, 0)),
                  pl.BlockSpec((1, cin), lambda i: (0, 0)),
                  pl.BlockSpec((cin, cout), lambda i: (0, 0))],
        out_specs=(pl.BlockSpec((tm, cout), lambda i: (i, 0)),
                   pl.BlockSpec((2, cout), lambda i: (0, 0))),
        compiler_params=pltpu.CompilerParams(
            dimension_semantics=("arbitrary",),
            vmem_limit_bytes=VMEM_LIMIT_BYTES),
        cost_estimate=pl.CostEstimate(
            flops=2 * mp * cin * cout, transcendentals=0,
            bytes_accessed=4 * (mp * cin + cin * cout + mp * cout + 2 * cout)),
    )(x_rows, s_in, g, b, w)


def _bn_affine(y_rows, s, g, b, tm, *, count, residual=None):
    mp, c = y_rows.shape
    has_res = residual is not None
    kern = functools.partial(_bn_affine_kernel, count=count, has_res=has_res)
    in_specs = [pl.BlockSpec((tm, c), lambda i: (i, 0)),
                pl.BlockSpec((2, c), lambda i: (0, 0)),
                pl.BlockSpec((1, c), lambda i: (0, 0)),
                pl.BlockSpec((1, c), lambda i: (0, 0))]
    args = [y_rows, s, g, b]
    if has_res:
        in_specs.append(pl.BlockSpec((tm, c), lambda i: (i, 0)))
        args.append(residual)
    return pl.pallas_call(
        kern,
        out_shape=jax.ShapeDtypeStruct((mp, c), jnp.float32),
        grid=(mp // tm,),
        in_specs=in_specs,
        out_specs=pl.BlockSpec((tm, c), lambda i: (i, 0)),
        compiler_params=pltpu.CompilerParams(
            dimension_semantics=("parallel",),    # no reduction -> megacore shardable
            vmem_limit_bytes=VMEM_LIMIT_BYTES),
    )(*args)


# --------------------------------------------------------------------------
# Module: parameter init + forward
# --------------------------------------------------------------------------
def init_inverted_residual(key, inp, oup, expand_ratio):
    hidden = int(round(inp * expand_ratio))
    ks = jax.random.split(key, 9)
    p = {}
    if expand_ratio != 1:
        p["w1"] = 0.1 * jax.random.normal(ks[0], (inp, hidden), jnp.float32)
        p["g1"] = 1.0 + 0.1 * jax.random.normal(ks[1], (1, hidden), jnp.float32)
        p["b1"] = 0.1 * jax.random.normal(ks[2], (1, hidden), jnp.float32)
    p["wdw"] = 0.1 * jax.random.normal(ks[3], (3, 3, hidden), jnp.float32)
    p["g2"] = 1.0 + 0.1 * jax.random.normal(ks[4], (1, hidden), jnp.float32)
    p["b2"] = 0.1 * jax.random.normal(ks[5], (1, hidden), jnp.float32)
    p["w3"] = 0.1 * jax.random.normal(ks[6], (hidden, oup), jnp.float32)
    p["g3"] = 1.0 + 0.1 * jax.random.normal(ks[7], (1, oup), jnp.float32)
    p["b3"] = 0.1 * jax.random.normal(ks[8], (1, oup), jnp.float32)
    return p


def inverted_residual(x_nchw, params, *, inp, oup, stride, expand_ratio,
                      row_tile=ROW_TILE):
    assert stride in (1, 2)
    identity = (stride == 1) and (inp == oup)
    hidden = int(round(inp * expand_ratio))

    cin_p = _round_up(inp, LANE)
    ch_p = _round_up(hidden, LANE)
    co_p = _round_up(oup, LANE)

    # NCHW -> NHWC (to match PyTorch I/O), pad channels once to a lane multiple.
    x = jnp.transpose(x_nchw, (0, 2, 3, 1)).astype(jnp.float32)
    N, H, W, _ = x.shape
    x = jnp.pad(x, ((0, 0), (0, 0), (0, 0), (0, cin_p - inp)))

    m1 = N * H * W
    tm1, mp1 = _pick_row_tile(m1, row_tile)
    x_rows = x.reshape(m1, cin_p)
    if mp1 != m1:
        x_rows = jnp.pad(x_rows, ((0, mp1 - m1), (0, 0)))

    # ---- stage 1: expand 1x1 conv (raw) + stats1 ----------------------------
    if expand_ratio != 1:
        w1 = _pad2(params["w1"], cin_p, ch_p)
        g1 = _pad_row(params["g1"], ch_p, 1.0)
        b1 = _pad_row(params["b1"], ch_p, 0.0)
        h1_rows, s1 = _pw_matmul_stats(x_rows, w1, tm1)
        pre_bn = True
    else:
        h1_rows = x_rows                      # hidden == inp, no expand / BN1
        s1 = jnp.zeros((2, ch_p), jnp.float32)
        g1 = jnp.ones((1, ch_p), jnp.float32)
        b1 = jnp.zeros((1, ch_p), jnp.float32)
        pre_bn = False

    h1 = h1_rows[:m1].reshape(N, H, W, ch_p)

    # ---- stage 2: BN1+ReLU (fused) -> depthwise 3x3 (raw) + stats2 -----------
    wdw = jnp.pad(params["wdw"], ((0, 0), (0, 0), (0, ch_p - hidden)))
    g2 = _pad_row(params["g2"], ch_p, 1.0)
    b2 = _pad_row(params["b2"], ch_p, 0.0)
    ho = (H + 2 - 3) // stride + 1
    wo = (W + 2 - 3) // stride + 1
    h2, s2 = _dw_conv_stats(h1, wdw, s1, g1, b1, stride=stride, pre_bn=pre_bn,
                            count=float(m1), out_hw=(ho, wo))

    # ---- stage 3: BN2+ReLU (fused) -> project 1x1 conv (raw) + stats3 --------
    m2 = N * ho * wo
    tm2, mp2 = _pick_row_tile(m2, row_tile)
    h2_rows = h2.reshape(m2, ch_p)
    if mp2 != m2:
        h2_rows = jnp.pad(h2_rows, ((0, mp2 - m2), (0, 0)))
    w3 = _pad2(params["w3"], ch_p, co_p)
    g3 = _pad_row(params["g3"], co_p, 1.0)
    b3 = _pad_row(params["b3"], co_p, 0.0)
    y3_rows, s3 = _pw_bn_relu_matmul_stats(h2_rows, s2, g2, b2, w3, tm2,
                                           count=float(m2), valid_rows=m2)

    # ---- stage 4: BN3 (+ residual) -------------------------------------------
    if identity:
        # stride == 1 and inp == oup  =>  m2 == m1, cin_p == co_p, same row tiling
        out_rows = _bn_affine(y3_rows, s3, g3, b3, tm2, count=float(m2),
                              residual=x_rows)
    else:
        out_rows = _bn_affine(y3_rows, s3, g3, b3, tm2, count=float(m2))

    out = out_rows[:m2, :oup].reshape(N, ho, wo, oup)
    return jnp.transpose(out, (0, 3, 1, 2))   # NHWC -> NCHW


# --------------------------------------------------------------------------
# Pure-JAX reference (for correctness check)
# --------------------------------------------------------------------------
def _bn_train_ref(x, g, b):
    mean = x.mean(axis=(0, 1, 2), keepdims=True)
    var = jnp.mean(jnp.square(x - mean), axis=(0, 1, 2), keepdims=True)
    return (x - mean) / jnp.sqrt(var + EPS) * g.reshape(1, 1, 1, -1) + b.reshape(1, 1, 1, -1)


def inverted_residual_ref(x_nchw, params, *, inp, oup, stride, expand_ratio):
    identity = (stride == 1) and (inp == oup)
    x = jnp.transpose(x_nchw, (0, 2, 3, 1)).astype(jnp.float32)
    h = x
    if expand_ratio != 1:
        h = jnp.einsum("nhwc,cd->nhwd", h, params["w1"])
        h = jnp.maximum(_bn_train_ref(h, params["g1"], params["b1"]), 0.0)
    h = jax.lax.conv_general_dilated(
        h, params["wdw"][:, :, None, :], (stride, stride), ((1, 1), (1, 1)),
        dimension_numbers=("NHWC", "HWIO", "NHWC"),
        feature_group_count=h.shape[-1])
    h = jnp.maximum(_bn_train_ref(h, params["g2"], params["b2"]), 0.0)
    h = jnp.einsum("nhwc,cd->nhwd", h, params["w3"])
    h = _bn_train_ref(h, params["g3"], params["b3"])
    if identity:
        h = h + x
    return jnp.transpose(h, (0, 3, 1, 2))


# --------------------------------------------------------------------------
if __name__ == "__main__":
    key = jax.random.PRNGKey(0)

    configs = [
        # (inp, oup, stride, expand_ratio, N, H, W)
        (4, 4, 1, 4, 2, 16, 16),   # expand path, identity/residual branch
        (4, 8, 2, 1, 2, 16, 16),   # no-expand path, strided, no residual
    ]
    for idx, (inp, oup, stride, er, N, H, W) in enumerate(configs):
        k_x, k_p, key = jax.random.split(key, 3)
        x = jax.random.normal(k_x, (N, inp, H, W), jnp.float32)
        params = init_inverted_residual(k_p, inp, oup, er)

        out = inverted_residual(x, params, inp=inp, oup=oup,
                                stride=stride, expand_ratio=er)
        out = jax.block_until_ready(out)

        ref = inverted_residual_ref(x, params, inp=inp, oup=oup,
                                    stride=stride, expand_ratio=er)
        assert out.shape == ref.shape, f"shape mismatch (config {idx})"
        assert bool(jnp.allclose(out, ref, rtol=2e-4, atol=2e-4)), \
            f"mismatch vs JAX reference (config {idx})"

    print("KERNEL_OK")
</pallas_src>

<mosaic_0001>
module attributes {stable_mosaic.version = 11 : i64} {
  func.func @_matmul_stats_kernel(%arg0: i32, %arg1: memref<256x128xf32, #tpu.memory_space<vmem>>, %arg2: memref<128x128xf32, #tpu.memory_space<vmem>>, %arg3: memref<256x128xf32, #tpu.memory_space<vmem>>, %arg4: memref<2x128xf32, #tpu.memory_space<vmem>>) attributes {dimension_semantics = [#tpu.dimension_semantics<arbitrary>], iteration_bounds = array<i64: 2>, scalar_prefetch = 0 : i64, scratch_operands = 0 : i64, tpu.core_type = #tpu.core_type<tc>, window_params = [{transform_indices = @transform_0, window_bounds = array<i64: 256, 128>}, {pipeline_mode = #tpu.pipeline_mode<synchronous>, transform_indices = @transform_1, window_bounds = array<i64: 128, 128>}, {transform_indices = @transform_2, window_bounds = array<i64: 256, 128>}, {pipeline_mode = #tpu.pipeline_mode<synchronous>, transform_indices = @transform_3, window_bounds = array<i64: 2, 128>}]} {
    %c0_i32 = arith.constant 0 : i32
    %0 = arith.cmpi eq, %arg0, %c0_i32 : i32
    %1 = arith.extui %0 : i1 to i32
    %c0_i32_0 = arith.constant 0 : i32
    %2 = arith.cmpi ne, %1, %c0_i32_0 : i32
    scf.if %2 {
      %cst_12 = arith.constant 0.000000e+00 : f32
      %16 = vector.broadcast %cst_12 : f32 to vector<2x128xf32>
      %c0_13 = arith.constant 0 : index
      %c0_14 = arith.constant 0 : index
      %17 = vector.load %arg4[%c0_13, %c0_14] : memref<2x128xf32, #tpu.memory_space<vmem>>, vector<2x128xf32>
      tpu.vector_store %arg4[%c0_13, %c0_14], %16 {strides = array<i32>} : memref<2x128xf32, #tpu.memory_space<vmem>>, vector<2x128xf32>,
    } else {
    }
    %c0 = arith.constant 0 : index
    %c0_1 = arith.constant 0 : index
    %3 = vector.load %arg1[%c0, %c0_1] : memref<256x128xf32, #tpu.memory_space<vmem>>, vector<256x128xf32>
    %c0_2 = arith.constant 0 : index
    %c0_3 = arith.constant 0 : index
    %4 = vector.load %arg2[%c0_2, %c0_3] : memref<128x128xf32, #tpu.memory_space<vmem>>, vector<128x128xf32>
    %cst = arith.constant dense<0.000000e+00> : vector<256x128xf32>
    %5 = tpu.matmul %3, %4, %cst {dimension_numbers = #tpu.dot_dimension_numbers<[1], [0], [0], [1], [0, 0, 1, 1], [], []>} : vector<256x128xf32>, vector<128x128xf32>, vector<256x128xf32> -> vector<256x128xf32>
    %c0_4 = arith.constant 0 : index
    %c0_5 = arith.constant 0 : index
    %6 = vector.load %arg3[%c0_4, %c0_5] : memref<256x128xf32, #tpu.memory_space<vmem>>, vector<256x128xf32>
    tpu.vector_store %arg3[%c0_4, %c0_5], %5 {strides = array<i32>} : memref<256x128xf32, #tpu.memory_space<vmem>>, vector<256x128xf32>,
    %cst_6 = arith.constant dense<0.000000e+00> : vector<128xf32>
    %7 = vector.multi_reduction <add>, %5, %cst_6 [0] : vector<256x128xf32> to vector<128xf32>
    %8 = vector.shape_cast %7 : vector<128xf32> to vector<1x128xf32>
    %9 = arith.mulf %5, %5 : vector<256x128xf32>
    %cst_7 = arith.constant dense<0.000000e+00> : vector<128xf32>
    %10 = vector.multi_reduction <add>, %9, %cst_7 [0] : vector<256x128xf32> to vector<128xf32>
    %11 = vector.shape_cast %10 : vector<128xf32> to vector<1x128xf32>
    %c0_8 = arith.constant 0 : index
    %c0_9 = arith.constant 0 : index
    %12 = vector.load %arg4[%c0_8, %c0_9] : memref<2x128xf32, #tpu.memory_space<vmem>>, vector<2x128xf32>
    %13 = tpu.concatenate %8, %11 in 0 : vector<1x128xf32>, vector<1x128xf32> -> vector<2x128xf32>
    %14 = arith.addf %12, %13 : vector<2x128xf32>
    %c0_10 = arith.constant 0 : index
    %c0_11 = arith.constant 0 : index
    %15 = vector.load %arg4[%c0_10, %c0_11] : memref<2x128xf32, #tpu.memory_space<vmem>>, vector<2x128xf32>
    tpu.vector_store %arg4[%c0_10, %c0_11], %14 {strides = array<i32>} : memref<2x128xf32, #tpu.memory_space<vmem>>, vector<2x128xf32>,
    return
  }
  func.func @transform_0(%arg0: i32) -> (i32, i32) {
    %c0_i32 = arith.constant 0 : i32
    %c0_i32_0 = arith.constant 0 : i32
    return %arg0, %c0_i32 : i32, i32
  }
  func.func @transform_1(%arg0: i32) -> (i32, i32) {
    %c0_i32 = arith.constant 0 : i32
    %c0_i32_0 = arith.constant 0 : i32
    %c0_i32_1 = arith.constant 0 : i32
    return %c0_i32, %c0_i32_0 : i32, i32
  }
  func.func @transform_2(%arg0: i32) -> (i32, i32) {
    %c0_i32 = arith.constant 0 : i32
    %c0_i32_0 = arith.constant 0 : i32
    return %arg0, %c0_i32 : i32, i32
  }
  func.func @transform_3(%arg0: i32) -> (i32, i32) {
    %c0_i32 = arith.constant 0 : i32
    %c0_i32_0 = arith.constant 0 : i32
    %c0_i32_1 = arith.constant 0 : i32
    return %c0_i32, %c0_i32_0 : i32, i32
  }
}

</mosaic_0001>

<llo_original>
// kernel: tpu_custom_call.1
$region0: #{tpu_custom_call.1}
  #allocation0 [shape = 'u32[]', space=smem, size = 0x4, offset = 0x4, fixed_abs, tag = 'smem constant byte address 0x4 - core index']
  #allocation1 [shape = 'u32[144,128]{1,0:T(1,128)}', space=vmem, size = 0x12000, scoped, tag = 'internal scratch']
  %s0 = inlined_call_operand.hbm [shape: f32[512,128], index: 0, kind: input, shape index: {}]
  %s1 = inlined_call_operand.hbm [shape: f32[128,128], index: 1, kind: input, shape index: {}]
  %s2 = inlined_call_operand.hbm [shape: f32[512,128], index: 2, kind: output, shape index: {0}]
  %s3 = inlined_call_operand.hbm [shape: f32[2,128], index: 3, kind: output, shape index: {1}]
  %4 = xla_tuple %s2, %s3
  %s5 = sld [smem:[#allocation0]]
  $region61: #{tpu_custom_call.1} parent=0
    _
  %s7 = ssub.s32 1, %s5
  %s8 = scalar_select 0, %s7, %s5
  $region1: #{tpu_custom_call.1} parent=0
    #allocation2 [shape = 'u8[262144]{0}', space=vmem, size = 0x40000, scoped, tag = 'input window, operand 0']
    #allocation3 [shape = 's32[2]{0}', space=sflag, size = 0x8, scoped, tag = 'scoped memory for tpu_custom_call.1']
    #allocation4 [shape = 's32[2]{0}', space=sflag, size = 0x8, scoped, tag = 'scoped memory for tpu_custom_call.1']
    #allocation5 [shape = 'u8[65536]{0}', space=vmem, size = 0x10000, scoped, tag = 'input window, operand 1, single buffered']
    #allocation6 [shape = 's32[1]{0}', space=sflag, size = 0x4, scoped, tag = 'scoped memory for tpu_custom_call.1']
    #allocation7 [shape = 'u8[262144]{0}', space=vmem, size = 0x40000, scoped, tag = 'output window, operand 0']
    #allocation8 [shape = 'u8[1024]{0}', space=vmem, size = 0x400, scoped, tag = 'output window, operand 1, single buffered']
    #allocation9 [shape = 's32[1]{0}', space=sflag, size = 0x4, scoped, tag = 'scoped memory for tpu_custom_call.1']
    %9 = vsyncpa [#allocation3], 0
    %s10 = scalar_lea.sflag [#allocation3], 1
    %11 = vsyncpa %s10, 0
    %12 = vsyncpa [#allocation6], 0
    %13 = vsyncpa [#allocation4], 0
    %s14 = scalar_lea.sflag [#allocation4], 1
    %15 = vsyncpa %s14, 0
    %16 = vsyncpa [#allocation9], 0
    loop: start=0, step=1, limit=4
    $region2: #{tpu_custom_call.1} parent=1 // loop_pre_header
      _
    $region3: #{tpu_custom_call.1} parent=1 // loop_header
      %s18 = sphi 0, %s22
      %p19 = scmp.ge.s32.totalorder %s18, 4
      %s28 = sphi 0, %s30
      %s31 = sphi 0, %s28
      %s32 = sphi 0, %s31
      %s48 = sphi 0, %s32
      %s52 = sphi 0, %s52
      %s54 = sphi 0, %s52
      %s55 = sphi 0, %s54
      %s69 = sphi 0, %s55
      %s75 = sphi 0, %s77
      %s78 = sphi 0, %s75
      %s79 = sphi 0, %s78
      %s95 = sphi 0, %s79
      %s99 = sphi 0, %s99
      %s101 = sphi 0, %s99
      %s102 = sphi 0, %s101
      %s116 = sphi 0, %s102
    $region4: #{tpu_custom_call.1} parent=1 // loop_header_branch
      %21 = sbr.rel (%p19) target = $region8
    $region5: #{tpu_custom_call.1} parent=1 // loop_body
      %s23 = ssub.s32 %s18, 1
      %s24 = ssub.s32 %s18, 2
      %s25 = sadd.s32 %s18, 1
      %s26 = ssub.s32 %s18, %s25
      %p27 = scmp.eq.s32.totalorder %s26, 0
      %s29 = sadd.s32 %s28, 1
      %s30 = scalar_select %p27, %s28, %s29
      %p33 = pneg %p27
      %p34 = scmp.eq.s32.totalorder %s18, 1
      %p35 = por %p33, %p34
      %p36 = scmp.ne.s32.totalorder %s28, %s31
      %p37 = scmp.eq.s32.totalorder %s18, 0
      %p38 = por %p36, %p37
      %p39 = scmp.ne.s32.totalorder %s28, %s31
      %p40 = scmp.eq.s32.totalorder %s23, 1
      %p41 = por %p39, %p40
      %p42 = scmp.ne.s32.totalorder %s31, %s32
      %p43 = scmp.eq.s32.totalorder %s23, 0
      %p44 = por %p42, %p43
      %p45 = scmp.ne.s32.totalorder %s31, %s32
      %p46 = scmp.eq.s32.totalorder %s24, 1
      %p47 = por %p45, %p46
      %p49 = scmp.ne.s32.totalorder %s32, %s48
      %p50 = scmp.eq.s32.totalorder %s24, 0
      %p51 = por %p49, %p50
      %s53 = sadd.s32 %s52, 1
      %p56 = scmp.eq.s32.totalorder %s18, 1
      %p57 = scmp.ne.s32.totalorder %s52, %s54
      %p58 = scmp.eq.s32.totalorder %s18, 0
      %p59 = por %p57, %p58
      %p60 = scmp.ne.s32.totalorder %s52, %s54
      %p61 = scmp.eq.s32.totalorder %s23, 1
      %p62 = por %p60, %p61
      %p63 = scmp.ne.s32.totalorder %s54, %s55
      %p64 = scmp.eq.s32.totalorder %s23, 0
      %p65 = por %p63, %p64
      %p66 = scmp.ne.s32.totalorder %s54, %s55
      %p67 = scmp.eq.s32.totalorder %s24, 1
      %p68 = por %p66, %p67
      %p70 = scmp.ne.s32.totalorder %s55, %s69
      %p71 = scmp.eq.s32.totalorder %s24, 0
      %p72 = por %p70, %p71
      %s73 = ssub.s32 %s18, %s25
      %p74 = scmp.eq.s32.totalorder %s73, 0
      %s76 = sadd.s32 %s75, 1
      %s77 = scalar_select %p74, %s75, %s76
      %p80 = pneg %p74
      %p81 = scmp.eq.s32.totalorder %s18, 1
      %p82 = por %p80, %p81
      %p83 = scmp.ne.s32.totalorder %s75, %s78
      %p84 = scmp.eq.s32.totalorder %s18, 0
      %p85 = por %p83, %p84
      %p86 = scmp.ne.s32.totalorder %s75, %s78
      %p87 = scmp.eq.s32.totalorder %s23, 1
      %p88 = por %p86, %p87
      %p89 = scmp.ne.s32.totalorder %s78, %s79
      %p90 = scmp.eq.s32.totalorder %s23, 0
      %p91 = por %p89, %p90
      %p92 = scmp.ne.s32.totalorder %s78, %s79
      %p93 = scmp.eq.s32.totalorder %s24, 1
      %p94 = por %p92, %p93
      %p96 = scmp.ne.s32.totalorder %s79, %s95
      %p97 = scmp.eq.s32.totalorder %s24, 0
      %p98 = por %p96, %p97
      %s100 = sadd.s32 %s99, 1
      %p103 = scmp.eq.s32.totalorder %s18, 1
      %p104 = scmp.ne.s32.totalorder %s99, %s101
      %p105 = scmp.eq.s32.totalorder %s18, 0
      %p106 = por %p104, %p105
      %p107 = scmp.ne.s32.totalorder %s99, %s101
      %p108 = scmp.eq.s32.totalorder %s23, 1
      %p109 = por %p107, %p108
      %p110 = scmp.ne.s32.totalorder %s101, %s102
      %p111 = scmp.eq.s32.totalorder %s23, 0
      %p112 = por %p110, %p111
      %p113 = scmp.ne.s32.totalorder %s101, %s102
      %p114 = scmp.eq.s32.totalorder %s24, 1
      %p115 = por %p113, %p114
      %p117 = scmp.ne.s32.totalorder %s102, %s116
      %p118 = scmp.eq.s32.totalorder %s24, 0
      %p119 = por %p117, %p118
      %p120 = scmp.le.s32.totalorder 1, %s18
      %p121 = scmp.lt.s32.totalorder %s18, 3
      %p122 = pnand %p120, %p121
      %p123 = pneg %p122
      // Predicated region
      $region9: #{tpu_custom_call.1} parent=5 // pred_check
        _
      $region10: #{tpu_custom_call.1} parent=5 // pred_check_branch
        %125 = sbr.rel (%p122) target = $region12
      $region11: #{tpu_custom_call.1} parent=5 // pred_region
        %s126 = ssub.s32 %s18, 1
        // Predicated region
        $region13: #{tpu_custom_call.1} parent=11 // pred_check
          %p127 = pneg %p65
        $region14: #{tpu_custom_call.1} parent=11 // pred_check_branch
          %129 = sbr.rel (%p127) target = $region16
        $region15: #{tpu_custom_call.1} parent=11 // pred_region
          %s131 = ssub.s32 2048, 2048
          %132 = vsyncadd [#allocation6], %s131
          %s133 = sshll.u32 [#allocation5], 4
          %s134 = int_to_ptr.vmem [resolvable:$true] %s133
          %139 = dma.hbm_to_vmem [thread:$0]  %s1, 2048, %s134, [#allocation6], 128, 128, 8
        $region16: #{tpu_custom_call.1} parent=11 // pred_fallthru
          _
      $region12: #{tpu_custom_call.1} parent=5 // pred_fallthru
        _
      %p140 = scmp.lt.s32.totalorder %s18, 2
      // Predicated region
      $region17: #{tpu_custom_call.1} parent=5 // pred_check
        %p141 = pneg %p140
      $region18: #{tpu_custom_call.1} parent=5 // pred_check_branch
        %143 = sbr.rel (%p141) target = $region20
      $region19: #{tpu_custom_call.1} parent=5 // pred_region
        // Predicated region
        $region21: #{tpu_custom_call.1} parent=19 // pred_check
          %p144 = pneg %p38
        $region22: #{tpu_custom_call.1} parent=19 // pred_check_branch
          %146 = sbr.rel (%p144) target = $region24
        $region23: #{tpu_custom_call.1} parent=19 // pred_region
          %s147 = sand.u32 %s28, 1
          %s148 = scalar_lea.sflag [#allocation3], %s147
          %s149 = sand.u32 %s28, 1
          %s150 = smul.addr %s149, 256
          %s151 = scalar_lea.vmem [#allocation2], %s150
          %s152 = smul.u32 32, %s18
          %s154 = ssub.s32 4096, 4096
          %155 = vsyncadd %s148, %s154
          %s156 = smul.addr %s152, 128
          %s157 = scalar_lea.hbm %s0, %s156
          %s158 = sshll.u32 %s151, 4
          %s159 = int_to_ptr.vmem [resolvable:$true] %s158
          %164 = dma.hbm_to_vmem [thread:$0]  %s157, 4096, %s159, %s148, 128, 128, 8
        $region24: #{tpu_custom_call.1} parent=19 // pred_fallthru
          _
      $region20: #{tpu_custom_call.1} parent=5 // pred_fallthru
        _
      %p165 = scmp.le.s32.totalorder 1, %s18
      %p166 = scmp.lt.s32.totalorder %s18, 3
      %p167 = pnand %p165, %p166
      %p168 = pneg %p167
      // Predicated region
      $region25: #{tpu_custom_call.1} parent=5 // pred_check
        _
      $region26: #{tpu_custom_call.1} parent=5 // pred_check_branch
        %170 = sbr.rel (%p167) target = $region28
      $region27: #{tpu_custom_call.1} parent=5 // pred_region
        %s171 = ssub.s32 %s18, 1
        %s172 = sand.u32 %s31, 1
        %s173 = scalar_lea.sflag [#allocation3], %s172
        %s174 = sand.u32 %s31, 1
        %s175 = smul.addr %s174, 256
        %s176 = scalar_lea.vmem [#allocation2], %s175
        // Predicated region
        $region29: #{tpu_custom_call.1} parent=27 // pred_check
          %p177 = pneg %p44
        $region30: #{tpu_custom_call.1} parent=27 // pred_check_branch
          %179 = sbr.rel (%p177) target = $region32
        $region31: #{tpu_custom_call.1} parent=27 // pred_region
          %180 = dma.done %s173, 4096
        $region32: #{tpu_custom_call.1} parent=27 // pred_fallthru
          _
        // Predicated region
        $region33: #{tpu_custom_call.1} parent=27 // pred_check
          %p181 = pneg %p65
        $region34: #{tpu_custom_call.1} parent=27 // pred_check_branch
          %183 = sbr.rel (%p181) target = $region36
        $region35: #{tpu_custom_call.1} parent=27 // pred_region
          %184 = dma.done [#allocation6], 2048
        $region36: #{tpu_custom_call.1} parent=27 // pred_fallthru
          _
        %s185 = sand.u32 %s31, 1
        %s186 = scalar_lea.sflag [#allocation3], %s185
        %s187 = sand.u32 %s31, 1
        %s188 = smul.addr %s187, 256
        %s189 = scalar_lea.vmem [#allocation2], %s188
        %p190 = pneg %p44
        %p191 = pneg %p41
        %p192 = pneg %p65
        %p193 = pneg %p62
        %p194 = pneg %p91
        %p195 = pneg %p88
        %s196 = sand.u32 %s78, 1
        %s197 = scalar_lea.sflag [#allocation4], %s196
        %s198 = sand.u32 %s78, 1
        %s199 = smul.addr %s198, 256
        %s200 = scalar_lea.vmem [#allocation7], %s199
        %p201 = pneg %p112
        %p202 = pneg %p109
        %s203 = smul.u32 32, %s23
        %s204 = smul.u32 32, %s23
        %p205 = scmp.eq.s32.totalorder %s23, 0
        // Predicated region
        $region37: #{tpu_custom_call.1} parent=27 // pred_check
          %p206 = pneg %p205
        $region38: #{tpu_custom_call.1} parent=27 // pred_check_branch
          %208 = sbr.rel (%p206) target = $region40
        $region39: #{tpu_custom_call.1} parent=27 // pred_region
          %209 = vst [vmem:[#allocation8] sm:$0x3] 0.0
        $region40: #{tpu_custom_call.1} parent=27 // pred_fallthru
          _
        %v210 = vld [vmem:[%s176] sm:$0xff]
        %v211 = vld [vmem:[%s176 + $0x8] sm:$0xff]
        %v212 = vld [vmem:[%s176 + $0x10] sm:$0xff]
        %v213 = vld [vmem:[%s176 + $0x18] sm:$0xff]
        %v214 = vld [vmem:[%s176 + $0x20] sm:$0xff]
        %v215 = vld [vmem:[%s176 + $0x28] sm:$0xff]
        %v216 = vld [vmem:[%s176 + $0x30] sm:$0xff]
        %v217 = vld [vmem:[%s176 + $0x38] sm:$0xff]
        %v218 = vld [vmem:[%s176 + $0x40] sm:$0xff]
        %v219 = vld [vmem:[%s176 + $0x48] sm:$0xff]
        %v220 = vld [vmem:[%s176 + $0x50] sm:$0xff]
        %v221 = vld [vmem:[%s176 + $0x58] sm:$0xff]
        %v222 = vld [vmem:[%s176 + $0x60] sm:$0xff]
        %v223 = vld [vmem:[%s176 + $0x68] sm:$0xff]
        %v224 = vld [vmem:[%s176 + $0x70] sm:$0xff]
        %v225 = vld [vmem:[%s176 + $0x78] sm:$0xff]
        %v226 = vld [vmem:[%s176 + $0x80] sm:$0xff]
        %v227 = vld [vmem:[%s176 + $0x88] sm:$0xff]
        %v228 = vld [vmem:[%s176 + $0x90] sm:$0xff]
        %v229 = vld [vmem:[%s176 + $0x98] sm:$0xff]
        %v230 = vld [vmem:[%s176 + $0xa0] sm:$0xff]
        %v231 = vld [vmem:[%s176 + $0xa8] sm:$0xff]
        %v232 = vld [vmem:[%s176 + $0xb0] sm:$0xff]
        %v233 = vld [vmem:[%s176 + $0xb8] sm:$0xff]
        %v234 = vld [vmem:[%s176 + $0xc0] sm:$0xff]
        %v235 = vld [vmem:[%s176 + $0xc8] sm:$0xff]
        %v236 = vld [vmem:[%s176 + $0xd0] sm:$0xff]
        %v237 = vld [vmem:[%s176 + $0xd8] sm:$0xff]
        %v238 = vld [vmem:[%s176 + $0xe0] sm:$0xff]
        %v239 = vld [vmem:[%s176 + $0xe8] sm:$0xff]
        %v240 = vld [vmem:[%s176 + $0xf0] sm:$0xff]
        %v241 = vld [vmem:[%s176 + $0xf8] sm:$0xff]
        %v242 = vld [vmem:[#allocation5] sm:$0xff]
        %v243 = vld [vmem:[#allocation5 + $0x8] sm:$0xff]
        %v244 = vld [vmem:[#allocation5 + $0x10] sm:$0xff]
        %v245 = vld [vmem:[#allocation5 + $0x18] sm:$0xff]
        %v246 = vld [vmem:[#allocation5 + $0x20] sm:$0xff]
        %v247 = vld [vmem:[#allocation5 + $0x28] sm:$0xff]
        %v248 = vld [vmem:[#allocation5 + $0x30] sm:$0xff]
        %v249 = vld [vmem:[#allocation5 + $0x38] sm:$0xff]
        %v250 = vld [vmem:[#allocation5 + $0x40] sm:$0xff]
        %v251 = vld [vmem:[#allocation5 + $0x48] sm:$0xff]
        %v252 = vld [vmem:[#allocation5 + $0x50] sm:$0xff]
        %v253 = vld [vmem:[#allocation5 + $0x58] sm:$0xff]
        %v254 = vld [vmem:[#allocation5 + $0x60] sm:$0xff]
        %v255 = vld [vmem:[#allocation5 + $0x68] sm:$0xff]
        %v256 = vld [vmem:[#allocation5 + $0x70] sm:$0xff]
        %v257 = vld [vmem:[#allocation5 + $0x78] sm:$0xff]
        %258 = vmatprep.subr.mxu0 0.0
        %259 = vmatpush1.msra.mxu0 %v257
        %260 = vmatprep.subr.mxu0 0.0
        %261 = vmatpush1.msra.mxu0 %v256
        %262 = vmatprep.subr.mxu0 0.0
        %263 = vmatpush1.msra.mxu0 %v255
        %264 = vmatprep.subr.mxu0 0.0
        %265 = vmatpush1.msra.mxu0 %v254
        %266 = vmatprep.subr.mxu0 0.0
        %267 = vmatpush1.msra.mxu0 %v253
        %268 = vmatprep.subr.mxu0 0.0
        %269 = vmatpush1.msra.mxu0 %v252
        %270 = vmatprep.subr.mxu0 0.0
        %271 = vmatpush1.msra.mxu0 %v251
        %272 = vmatprep.subr.mxu0 0.0
        %273 = vmatpush1.msra.mxu0 %v250
        %274 = vmatprep.subr.mxu0 0.0
        %275 = vmatpush1.msra.mxu0 %v249
        %276 = vmatprep.subr.mxu0 0.0
        %277 = vmatpush1.msra.mxu0 %v248
        %278 = vmatprep.subr.mxu0 0.0
        %279 = vmatpush1.msra.mxu0 %v247
        %280 = vmatprep.subr.mxu0 0.0
        %281 = vmatpush1.msra.mxu0 %v246
        %282 = vmatprep.subr.mxu0 0.0
        %283 = vmatpush1.msra.mxu0 %v245
        %284 = vmatprep.subr.mxu0 0.0
        %285 = vmatpush1.msra.mxu0 %v244
        %286 = vmatprep.subr.mxu0 0.0
        %287 = vmatpush1.msra.mxu0 %v243
        %288 = vmatprep.subr.mxu0 0.0
        %289 = vmatpush1.msra.mxu0 %v242
        %290 = vmatprep.subr.mxu0 0.0
        %291 = vmatpush2.msra.mxu0 0.0
        %292 = vmatprep.subr.mxu0 0.0
        %293 = vmatpush2.msra.mxu0 0.0
        %294 = vmatprep.subr.mxu0 0.0
        %295 = vmatpush2.msra.mxu0 0.0
        %296 = vmatprep.subr.mxu0 0.0
        %297 = vmatpush2.msra.mxu0 0.0
        %298 = vmatprep.subr.mxu0 0.0
        %299 = vmatpush2.msra.mxu0 0.0
        %300 = vmatprep.subr.mxu0 0.0
        %301 = vmatpush2.msra.mxu0 0.0
        %302 = vmatprep.subr.mxu0 0.0
        %303 = vmatpush2.msra.mxu0 0.0
        %304 = vmatprep.subr.mxu0 0.0
        %305 = vmatpush2.msra.mxu0 0.0
        %306 = vmatprep.subr.mxu0 0.0
        %307 = vmatpush2.msra.mxu0 0.0
        %308 = vmatprep.subr.mxu0 0.0
        %309 = vmatpush2.msra.mxu0 0.0
        %310 = vmatprep.subr.mxu0 0.0
        %311 = vmatpush2.msra.mxu0 0.0
        %312 = vmatprep.subr.mxu0 0.0
        %313 = vmatpush2.msra.mxu0 0.0
        %314 = vmatprep.subr.mxu0 0.0
        %315 = vmatpush2.msra.mxu0 0.0
        %316 = vmatprep.subr.mxu0 0.0
        %317 = vmatpush2.msra.mxu0 0.0
        %318 = vmatprep.subr.mxu0 0.0
        %319 = vmatpush2.msra.mxu0 0.0
        %320 = vmatprep.subr.mxu0 0.0
        %321 = vmatpush2.msra.mxu0 0.0
        %322 = vmatprep.mubr.f32.mxu0 0.0
        %323 = vmatmul.mubr.f32.gmra.mxu0 %v210
        %v324 = vpop.f32.mrf.mxu0
        %v325 = vadd.f32 0.0, %v324
        %v326 = vpop.f32.mrf.mxu0
        %327 = vmatprep.mubr.f32.mxu0 0.0
        %328 = vmatmul.mubr.f32.gmra.mxu0 %v211
        %v329 = vpop.f32.mrf.mxu0
        %v330 = vadd.f32 0.0, %v329
        %v331 = vpop.f32.mrf.mxu0
        %332 = vmatprep.mubr.f32.mxu0 0.0
        %333 = vmatmul.mubr.f32.gmra.mxu0 %v212
        %v334 = vpop.f32.mrf.mxu0
        %v335 = vadd.f32 0.0, %v334
        %v336 = vpop.f32.mrf.mxu0
        %337 = vmatprep.mubr.f32.mxu0 0.0
        %338 = vmatmul.mubr.f32.gmra.mxu0 %v213
        %v339 = vpop.f32.mrf.mxu0
        %v340 = vadd.f32 0.0, %v339
        %v341 = vpop.f32.mrf.mxu0
        %342 = vmatprep.mubr.f32.mxu0 0.0
        %343 = vmatmul.mubr.f32.gmra.mxu0 %v214
        %v344 = vpop.f32.mrf.mxu0
        %v345 = vadd.f32 0.0, %v344
        %v346 = vpop.f32.mrf.mxu0
        %347 = vmatprep.mubr.f32.mxu0 0.0
        %348 = vmatmul.mubr.f32.gmra.mxu0 %v215
        %v349 = vpop.f32.mrf.mxu0
        %v350 = vadd.f32 0.0, %v349
        %v351 = vpop.f32.mrf.mxu0
        %352 = vmatprep.mubr.f32.mxu0 0.0
        %353 = vmatmul.mubr.f32.gmra.mxu0 %v216
        %v354 = vpop.f32.mrf.mxu0
        %v355 = vadd.f32 0.0, %v354
        %v356 = vpop.f32.mrf.mxu0
        %357 = vmatprep.mubr.f32.mxu0 0.0
        %358 = vmatmul.mubr.f32.gmra.mxu0 %v217
        %v359 = vpop.f32.mrf.mxu0
        %v360 = vadd.f32 0.0, %v359
        %v361 = vpop.f32.mrf.mxu0
        %362 = vmatprep.mubr.f32.mxu0 0.0
        %363 = vmatmul.mubr.f32.gmra.mxu0 %v218
        %v364 = vpop.f32.mrf.mxu0
        %v365 = vadd.f32 0.0, %v364
        %v366 = vpop.f32.mrf.mxu0
        %367 = vmatprep.mubr.f32.mxu0 0.0
        %368 = vmatmul.mubr.f32.gmra.mxu0 %v219
        %v369 = vpop.f32.mrf.mxu0
        %v370 = vadd.f32 0.0, %v369
        %v371 = vpop.f32.mrf.mxu0
        %372 = vmatprep.mubr.f32.mxu0 0.0
        %373 = vmatmul.mubr.f32.gmra.mxu0 %v220
        %v374 = vpop.f32.mrf.mxu0
        %v375 = vadd.f32 0.0, %v374
        %v376 = vpop.f32.mrf.mxu0
        %377 = vmatprep.mubr.f32.mxu0 0.0
        %378 = vmatmul.mubr.f32.gmra.mxu0 %v221
        %v379 = vpop.f32.mrf.mxu0
        %v380 = vadd.f32 0.0, %v379
        %v381 = vpop.f32.mrf.mxu0
        %382 = vmatprep.mubr.f32.mxu0 0.0
        %383 = vmatmul.mubr.f32.gmra.mxu0 %v222
        %v384 = vpop.f32.mrf.mxu0
        %v385 = vadd.f32 0.0, %v384
        %v386 = vpop.f32.mrf.mxu0
        %387 = vmatprep.mubr.f32.mxu0 0.0
        %388 = vmatmul.mubr.f32.gmra.mxu0 %v223
        %v389 = vpop.f32.mrf.mxu0
        %v390 = vadd.f32 0.0, %v389
        %v391 = vpop.f32.mrf.mxu0
        %392 = vmatprep.mubr.f32.mxu0 0.0
        %393 = vmatmul.mubr.f32.gmra.mxu0 %v224
        %v394 = vpop.f32.mrf.mxu0
        %v395 = vadd.f32 0.0, %v394
        %v396 = vpop.f32.mrf.mxu0
        %397 = vmatprep.mubr.f32.mxu0 0.0
        %398 = vmatmul.mubr.f32.gmra.mxu0 %v225
        %v399 = vpop.f32.mrf.mxu0
        %v400 = vadd.f32 0.0, %v399
        %v401 = vpop.f32.mrf.mxu0
        %402 = vmatprep.mubr.f32.mxu0 0.0
        %403 = vmatmul.mubr.f32.gmra.mxu0 %v226
        %v404 = vpop.f32.mrf.mxu0
        %v405 = vadd.f32 0.0, %v404
        %v406 = vpop.f32.mrf.mxu0
        %407 = vmatprep.mubr.f32.mxu0 0.0
        %408 = vmatmul.mubr.f32.gmra.mxu0 %v227
        %v409 = vpop.f32.mrf.mxu0
        %v410 = vadd.f32 0.0, %v409
        %v411 = vpop.f32.mrf.mxu0
        %412 = vmatprep.mubr.f32.mxu0 0.0
        %413 = vmatmul.mubr.f32.gmra.mxu0 %v228
        %v414 = vpop.f32.mrf.mxu0
        %v415 = vadd.f32 0.0, %v414
        %v416 = vpop.f32.mrf.mxu0
        %417 = vmatprep.mubr.f32.mxu0 0.0
        %418 = vmatmul.mubr.f32.gmra.mxu0 %v229
        %v419 = vpop.f32.mrf.mxu0
        %v420 = vadd.f32 0.0, %v419
        %v421 = vpop.f32.mrf.mxu0
        %422 = vmatprep.mubr.f32.mxu0 0.0
        %423 = vmatmul.mubr.f32.gmra.mxu0 %v230
        %v424 = vpop.f32.mrf.mxu0
        %v425 = vadd.f32 0.0, %v424
        %v426 = vpop.f32.mrf.mxu0
        %427 = vmatprep.mubr.f32.mxu0 0.0
        %428 = vmatmul.mubr.f32.gmra.mxu0 %v231
        %v429 = vpop.f32.mrf.mxu0
        %v430 = vadd.f32 0.0, %v429
        %v431 = vpop.f32.mrf.mxu0
        %432 = vmatprep.mubr.f32.mxu0 0.0
        %433 = vmatmul.mubr.f32.gmra.mxu0 %v232
        %v434 = vpop.f32.mrf.mxu0
        %v435 = vadd.f32 0.0, %v434
        %v436 = vpop.f32.mrf.mxu0
        %437 = vmatprep.mubr.f32.mxu0 0.0
        %438 = vmatmul.mubr.f32.gmra.mxu0 %v233
        %v439 = vpop.f32.mrf.mxu0
        %v440 = vadd.f32 0.0, %v439
        %v441 = vpop.f32.mrf.mxu0
        %442 = vmatprep.mubr.f32.mxu0 0.0
        %443 = vmatmul.mubr.f32.gmra.mxu0 %v234
        %v444 = vpop.f32.mrf.mxu0
        %v445 = vadd.f32 0.0, %v444
        %v446 = vpop.f32.mrf.mxu0
        %447 = vmatprep.mubr.f32.mxu0 0.0
        %448 = vmatmul.mubr.f32.gmra.mxu0 %v235
        %v449 = vpop.f32.mrf.mxu0
        %v450 = vadd.f32 0.0, %v449
        %v451 = vpop.f32.mrf.mxu0
        %452 = vmatprep.mubr.f32.mxu0 0.0
        %453 = vmatmul.mubr.f32.gmra.mxu0 %v236
        %v454 = vpop.f32.mrf.mxu0
        %v455 = vadd.f32 0.0, %v454
        %v456 = vpop.f32.mrf.mxu0
        %457 = vmatprep.mubr.f32.mxu0 0.0
        %458 = vmatmul.mubr.f32.gmra.mxu0 %v237
        %v459 = vpop.f32.mrf.mxu0
        %v460 = vadd.f32 0.0, %v459
        %v461 = vpop.f32.mrf.mxu0
        %462 = vmatprep.mubr.f32.mxu0 0.0
        %463 = vmatmul.mubr.f32.gmra.mxu0 %v238
        %v464 = vpop.f32.mrf.mxu0
        %v465 = vadd.f32 0.0, %v464
        %v466 = vpop.f32.mrf.mxu0
        %467 = vmatprep.mubr.f32.mxu0 0.0
        %468 = vmatmul.mubr.f32.gmra.mxu0 %v239
        %v469 = vpop.f32.mrf.mxu0
        %v470 = vadd.f32 0.0, %v469
        %v471 = vpop.f32.mrf.mxu0
        %472 = vmatprep.mubr.f32.mxu0 0.0
        %473 = vmatmul.mubr.f32.gmra.mxu0 %v240
        %v474 = vpop.f32.mrf.mxu0
        %v475 = vadd.f32 0.0, %v474
        %v476 = vpop.f32.mrf.mxu0
        %477 = vmatprep.mubr.f32.mxu0 0.0
        %478 = vmatmul.mubr.f32.gmra.mxu0 %v241
        %v479 = vpop.f32.mrf.mxu0
        %v480 = vadd.f32 0.0, %v479
        %v481 = vpop.f32.mrf.mxu0
        %482 = vdwg.mxu0
        %483 = vst [vmem:[%s200] sm:$0xff] %v325
        %484 = vst [vmem:[%s200 + $0x8] sm:$0xff] %v330
        %485 = vst [vmem:[%s200 + $0x10] sm:$0xff] %v335
        %486 = vst [vmem:[%s200 + $0x18] sm:$0xff] %v340
        %487 = vst [vmem:[%s200 + $0x20] sm:$0xff] %v345
        %488 = vst [vmem:[%s200 + $0x28] sm:$0xff] %v350
        %489 = vst [vmem:[%s200 + $0x30] sm:$0xff] %v355
        %490 = vst [vmem:[%s200 + $0x38] sm:$0xff] %v360
        %491 = vst [vmem:[%s200 + $0x40] sm:$0xff] %v365
        %492 = vst [vmem:[%s200 + $0x48] sm:$0xff] %v370
        %493 = vst [vmem:[%s200 + $0x50] sm:$0xff] %v375
        %494 = vst [vmem:[%s200 + $0x58] sm:$0xff] %v380
        %495 = vst [vmem:[%s200 + $0x60] sm:$0xff] %v385
        %496 = vst [vmem:[%s200 + $0x68] sm:$0xff] %v390
        %497 = vst [vmem:[%s200 + $0x70] sm:$0xff] %v395
        %498 = vst [vmem:[%s200 + $0x78] sm:$0xff] %v400
        %499 = vst [vmem:[%s200 + $0x80] sm:$0xff] %v405
        %500 = vst [vmem:[%s200 + $0x88] sm:$0xff] %v410
        %501 = vst [vmem:[%s200 + $0x90] sm:$0xff] %v415
        %502 = vst [vmem:[%s200 + $0x98] sm:$0xff] %v420
        %503 = vst [vmem:[%s200 + $0xa0] sm:$0xff] %v425
        %504 = vst [vmem:[%s200 + $0xa8] sm:$0xff] %v430
        %505 = vst [vmem:[%s200 + $0xb0] sm:$0xff] %v435
        %506 = vst [vmem:[%s200 + $0xb8] sm:$0xff] %v440
        %507 = vst [vmem:[%s200 + $0xc0] sm:$0xff] %v445
        %508 = vst [vmem:[%s200 + $0xc8] sm:$0xff] %v450
        %509 = vst [vmem:[%s200 + $0xd0] sm:$0xff] %v455
        %510 = vst [vmem:[%s200 + $0xd8] sm:$0xff] %v460
        %511 = vst [vmem:[%s200 + $0xe0] sm:$0xff] %v465
        %512 = vst [vmem:[%s200 + $0xe8] sm:$0xff] %v470
        %513 = vst [vmem:[%s200 + $0xf0] sm:$0xff] %v475
        %514 = vst [vmem:[%s200 + $0xf8] sm:$0xff] %v480
        %v515 = vadd.f32 %v325, %v330
        %v516 = vadd.f32 %v515, %v335
        %v517 = vadd.f32 %v516, %v340
        %v518 = vadd.f32 %v517, %v345
        %v519 = vadd.f32 %v518, %v350
        %v520 = vadd.f32 %v519, %v355
        %v521 = vadd.f32 %v520, %v360
        %v522 = vadd.f32 %v521, %v365
        %v523 = vadd.f32 %v522, %v370
        %v524 = vadd.f32 %v523, %v375
        %v525 = vadd.f32 %v524, %v380
        %v526 = vadd.f32 %v525, %v385
        %v527 = vadd.f32 %v526, %v390
        %v528 = vadd.f32 %v527, %v395
        %v529 = vadd.f32 %v528, %v400
        %v530 = vadd.f32 %v529, %v405
        %v531 = vadd.f32 %v530, %v410
        %v532 = vadd.f32 %v531, %v415
        %v533 = vadd.f32 %v532, %v420
        %v534 = vadd.f32 %v533, %v425
        %v535 = vadd.f32 %v534, %v430
        %v536 = vadd.f32 %v535, %v435
        %v537 = vadd.f32 %v536, %v440
        %v538 = vadd.f32 %v537, %v445
        %v539 = vadd.f32 %v538, %v450
        %v540 = vadd.f32 %v539, %v455
        %v541 = vadd.f32 %v540, %v460
        %v542 = vadd.f32 %v541, %v465
        %v543 = vadd.f32 %v542, %v470
        %v544 = vadd.f32 %v543, %v475
        %v545 = vadd.f32 %v544, %v480
        %v546 = vrot.slane %v545, 4
        %v547 = vadd.f32 %v545, %v546
        %v548 = vrot.slane %v547, 2
        %v549 = vadd.f32 %v547, %v548
        %v550 = vrot.slane %v549, 1
        %v551 = vadd.f32 %v549, %v550
        %v552 = vmul.f32 %v325, %v325
        %v553 = vmul.f32 %v330, %v330
        %v554 = vmul.f32 %v335, %v335
        %v555 = vmul.f32 %v340, %v340
        %v556 = vmul.f32 %v345, %v345
        %v557 = vmul.f32 %v350, %v350
        %v558 = vmul.f32 %v355, %v355
        %v559 = vmul.f32 %v360, %v360
        %v560 = vmul.f32 %v365, %v365
        %v561 = vmul.f32 %v370, %v370
        %v562 = vmul.f32 %v375, %v375
        %v563 = vmul.f32 %v380, %v380
        %v564 = vmul.f32 %v385, %v385
        %v565 = vmul.f32 %v390, %v390
        %v566 = vmul.f32 %v395, %v395
        %v567 = vmul.f32 %v400, %v400
        %v568 = vmul.f32 %v405, %v405
        %v569 = vmul.f32 %v410, %v410
        %v570 = vmul.f32 %v415, %v415
        %v571 = vmul.f32 %v420, %v420
        %v572 = vmul.f32 %v425, %v425
        %v573 = vmul.f32 %v430, %v430
        %v574 = vmul.f32 %v435, %v435
        %v575 = vmul.f32 %v440, %v440
        %v576 = vmul.f32 %v445, %v445
        %v577 = vmul.f32 %v450, %v450
        %v578 = vmul.f32 %v455, %v455
        %v579 = vmul.f32 %v460, %v460
        %v580 = vmul.f32 %v465, %v465
        %v581 = vmul.f32 %v470, %v470
        %v582 = vmul.f32 %v475, %v475
        %v583 = vmul.f32 %v480, %v480
        %v584 = vadd.f32 %v552, %v553
        %v585 = vadd.f32 %v584, %v554
        %v586 = vadd.f32 %v585, %v555
        %v587 = vadd.f32 %v586, %v556
        %v588 = vadd.f32 %v587, %v557
        %v589 = vadd.f32 %v588, %v558
        %v590 = vadd.f32 %v589, %v559
        %v591 = vadd.f32 %v590, %v560
        %v592 = vadd.f32 %v591, %v561
        %v593 = vadd.f32 %v592, %v562
        %v594 = vadd.f32 %v593, %v563
        %v595 = vadd.f32 %v594, %v564
        %v596 = vadd.f32 %v595, %v565
        %v597 = vadd.f32 %v596, %v566
        %v598 = vadd.f32 %v597, %v567
        %v599 = vadd.f32 %v598, %v568
        %v600 = vadd.f32 %v599, %v569
        %v601 = vadd.f32 %v600, %v570
        %v602 = vadd.f32 %v601, %v571
        %v603 = vadd.f32 %v602, %v572
        %v604 = vadd.f32 %v603, %v573
        %v605 = vadd.f32 %v604, %v574
        %v606 = vadd.f32 %v605, %v575
        %v607 = vadd.f32 %v606, %v576
        %v608 = vadd.f32 %v607, %v577
        %v609 = vadd.f32 %v608, %v578
        %v610 = vadd.f32 %v609, %v579
        %v611 = vadd.f32 %v610, %v580
        %v612 = vadd.f32 %v611, %v581
        %v613 = vadd.f32 %v612, %v582
        %v614 = vadd.f32 %v613, %v583
        %v615 = vrot.slane %v614, 4
        %v616 = vadd.f32 %v614, %v615
        %v617 = vrot.slane %v616, 2
        %v618 = vadd.f32 %v616, %v617
        %v619 = vrot.slane %v618, 1
        %v620 = vadd.f32 %v618, %v619
        %v621 = vld [vmem:[#allocation8] sm:$0x3]
        %vm622 = vcmask 1040384
        %v623 = vsel %vm622, %v551, %v620
        %v624 = vadd.f32 %v621, %v623
        %625 = vst [vmem:[#allocation8] sm:$0x3] %v624
        %s626 = sand.u32 %s78, 1
        %s627 = scalar_lea.sflag [#allocation4], %s626
        %s628 = sand.u32 %s78, 1
        %s629 = smul.addr %s628, 256
        %s630 = scalar_lea.vmem [#allocation7], %s629
        // Predicated region
        $region41: #{tpu_custom_call.1} parent=27 // pred_check
          %p631 = pneg %p88
        $region42: #{tpu_custom_call.1} parent=27 // pred_check_branch
          %633 = sbr.rel (%p631) target = $region44
        $region43: #{tpu_custom_call.1} parent=27 // pred_region
          %s634 = smul.u32 32, %s23
          %s636 = ssub.s32 4096, 4096
          %637 = vsyncadd %s627, %s636
          %s638 = smul.addr %s634, 128
          %s639 = scalar_lea.hbm %s2, %s638
          %s640 = sshll.u32 %s630, 4
          %s641 = int_to_ptr.vmem [resolvable:$true] %s640
          %646 = dma.vmem_to_hbm [thread:$0]  %s641, 4096, %s639, %s627, 128, 128, 8
        $region44: #{tpu_custom_call.1} parent=27 // pred_fallthru
          _
        // Predicated region
        $region45: #{tpu_custom_call.1} parent=27 // pred_check
          %p647 = pneg %p109
        $region46: #{tpu_custom_call.1} parent=27 // pred_check_branch
          %649 = sbr.rel (%p647) target = $region48
        $region47: #{tpu_custom_call.1} parent=27 // pred_region
          %s651 = ssub.s32 32, 32
          %652 = vsyncadd [#allocation9], %s651
          %s654 = sshll.u32 [#allocation8], 4
          %s655 = int_to_ptr.vmem [resolvable:$true] %s654
          %657 = dma.vmem_to_hbm [thread:$0]  %s655, 32, %s3, [#allocation9]
        $region48: #{tpu_custom_call.1} parent=27 // pred_fallthru
          _
        // Predicated region
        $region49: #{tpu_custom_call.1} parent=27 // pred_check
          %p658 = pneg %p109
        $region50: #{tpu_custom_call.1} parent=27 // pred_check_branch
          %660 = sbr.rel (%p658) target = $region52
        $region51: #{tpu_custom_call.1} parent=27 // pred_region
          %661 = dma.done [#allocation9], 32
        $region52: #{tpu_custom_call.1} parent=27 // pred_fallthru
          _
      $region28: #{tpu_custom_call.1} parent=5 // pred_fallthru
        _
      %p662 = scmp.le.s32.totalorder 2, %s18
      // Predicated region
      $region53: #{tpu_custom_call.1} parent=5 // pred_check
        %p663 = pneg %p662
      $region54: #{tpu_custom_call.1} parent=5 // pred_check_branch
        %665 = sbr.rel (%p663) target = $region56
      $region55: #{tpu_custom_call.1} parent=5 // pred_region
        %s666 = ssub.s32 %s18, 2
        // Predicated region
        $region57: #{tpu_custom_call.1} parent=55 // pred_check
          %p667 = pneg %p94
        $region58: #{tpu_custom_call.1} parent=55 // pred_check_branch
          %669 = sbr.rel (%p667) target = $region60
        $region59: #{tpu_custom_call.1} parent=55 // pred_region
          %s670 = sand.u32 %s79, 1
          %s671 = scalar_lea.sflag [#allocation4], %s670
          %s672 = sand.u32 %s79, 1
          %s673 = smul.addr %s672, 256
          %s674 = scalar_lea.vmem [#allocation7], %s673
          %675 = dma.done %s671, 4096
        $region60: #{tpu_custom_call.1} parent=55 // pred_fallthru
          _
      $region56: #{tpu_custom_call.1} parent=5 // pred_fallthru
        _
    $region6: #{tpu_custom_call.1} parent=1 // loop_footer
      %s22 = sadd.s32 1, %s18
    $region7: #{tpu_custom_call.1} parent=1 // loop_footer_branch
      %17 = sbr.rel target = $region3
    $region8: #{tpu_custom_call.1} parent=1 // loop_exit
      _
    %676 = vsyncpa [#allocation3], 1
    %s677 = scalar_lea.sflag [#allocation3], 1
    %678 = vsyncpa %s677, 1
    %679 = vsyncpa [#allocation6], 1
    %680 = vsyncpa [#allocation4], 1
    %s681 = scalar_lea.sflag [#allocation4], 1
    %682 = vsyncpa %s681, 1
    %683 = vsyncpa [#allocation9], 1

</llo_original>
